<compile_context>
chip_gen: v7x
topology: tpu7x:2x2x1
jax: 0.10.0
libtpu: 0.0.40
codegen_flags: <defaults>
</compile_context>

<pallas_src>
import numpy as np
import jax
import jax.numpy as jnp
from jax.experimental import pallas as pl
from jax.experimental.pallas import tpu as pltpu


_COMPILER_PARAMS = pltpu.CompilerParams(
    dimension_semantics=("parallel",),       # row-tile axis -> both TCs on v7x
    vmem_limit_bytes=64 * 1024 * 1024,
)


def _row_tile(n):
    """Row-tile size: 256 for large divisible N, otherwise the full array
    (block shapes must divide (8,128) or equal the full dims)."""
    if n >= 512 and n % 256 == 0:
        return 256
    return n


# ----------------------------- Pallas kernels -------------------------------

def _gin_mlp(x, w1_ref, b1_ref, w2_ref, b2_ref):
    """gin_nn (Linear -> ReLU -> Linear) followed by the outer ReLU act.
    bf16 MXU operands, f32 accumulation, f32 elementwise."""
    x = jnp.dot(x.astype(jnp.bfloat16), w1_ref[...].astype(jnp.bfloat16),
                preferred_element_type=jnp.float32) + b1_ref[...]
    x = jnp.maximum(x, 0.0)
    x = jnp.dot(x.astype(jnp.bfloat16), w2_ref[...].astype(jnp.bfloat16),
                preferred_element_type=jnp.float32) + b2_ref[...]
    return jnp.maximum(x, 0.0)


def gin_gcn_kernel(gT_ref, h_ref, w1_ref, b1_ref, w2_ref, b2_ref, hout_ref):
    """GIN conv (eps=0) + 2-layer MLP + outer ReLU, one row tile per grid step."""
    tm = hout_ref.shape[0]
    r0 = pl.multiple_of(pl.program_id(0) * tm, 8)
    h_full = h_ref[...]                               # (N, D) f32
    h_rows = h_ref[pl.ds(r0, tm), :]                  # (TM, D) self term
    # agg[t] = sum_i A_bin[i, t] * h[i] == (A_bin^T)[tile] @ h   (layout-clean)
    agg = jnp.dot(gT_ref[...], h_full.astype(jnp.bfloat16),
                  preferred_element_type=jnp.float32)
    hout_ref[...] = _gin_mlp(h_rows + agg, w1_ref, b1_ref, w2_ref, b2_ref)


def down_level_kernel(gT_ref, g_ref, h_ref, w1_ref, b1_ref, w2_ref, b2_ref,
                      wf_ref, sb_ref, hout_ref, reach_ref, scores_ref):
    """Fused per-level hot path: GIN-GCN + pool scores + 3-hop reachability."""
    tm = hout_ref.shape[0]
    r0 = pl.multiple_of(pl.program_id(0) * tm, 8)

    # --- GIN-GCN ---
    h_full = h_ref[...]                               # (N, D) f32
    h_rows = h_ref[pl.ds(r0, tm), :]                  # (TM, D)
    agg = jnp.dot(gT_ref[...], h_full.astype(jnp.bfloat16),
                  preferred_element_type=jnp.float32)
    h_out = _gin_mlp(h_rows + agg, w1_ref, b1_ref, w2_ref, b2_ref)
    hout_ref[...] = h_out

    # --- pool scores, lane-dense (1, TM) ---
    # scores = sigmoid( wfin0 * feature_proj(h_out) + [structure part + biases] )
    fw = jax.lax.dot_general(wf_ref[...], h_out, (((1,), (1,)), ((), ())),
                             preferred_element_type=jnp.float32)     # (1, TM)
    scores_ref[...] = jax.nn.sigmoid(fw + sb_ref[...])

    # --- 3-hop reachability: bool(A + A^2 + A^3) for this row tile ---
    g_full = g_ref[...]                               # (N, N) bf16 binary
    u_rows = g_ref[pl.ds(r0, tm), :]                  # (TM, N) bf16 binary
    u2 = jnp.dot(u_rows, g_full, preferred_element_type=jnp.float32)
    # bf16 path counts may saturate; only the >0 pattern matters for reach3.
    u3 = jnp.dot(u2.astype(jnp.bfloat16), g_full, preferred_element_type=jnp.float32)
    s = u_rows.astype(jnp.float32) + u2 + u3
    reach_ref[...] = (s > 0).astype(jnp.float32)


# ------------------------------ kernel wrappers ------------------------------

def gcn_forward(g, h, p):
    """GIN GCN layer (bottom / up path) as one pallas_call."""
    N, D = h.shape
    gT_bin = (g.T > 0).astype(jnp.bfloat16)           # binarize once, pre-transposed
    tm = _row_tile(N)
    return pl.pallas_call(
        gin_gcn_kernel,
        grid=(N // tm,),
        in_specs=[
            pl.BlockSpec((tm, N), lambda i: (i, 0)),   # A_bin^T row tile
            pl.BlockSpec((N, D), lambda i: (0, 0)),    # h full (needed by agg)
            pl.BlockSpec((D, D), lambda i: (0, 0)),    # w1
            pl.BlockSpec((1, D), lambda i: (0, 0)),    # b1
            pl.BlockSpec((D, D), lambda i: (0, 0)),    # w2
            pl.BlockSpec((1, D), lambda i: (0, 0)),    # b2
        ],
        out_specs=pl.BlockSpec((tm, D), lambda i: (i, 0)),
        out_shape=jax.ShapeDtypeStruct((N, D), jnp.float32),
        compiler_params=_COMPILER_PARAMS,
    )(gT_bin, h, p["w1"], p["b1"], p["w2"], p["b2"])


def down_level_forward(g, h, gcn_p, pool_p, c):
    """One fused pallas_call per down level -> (h_new, reach3, scores)."""
    N, D = h.shape
    g_bin = (g > 0).astype(jnp.bfloat16)
    gT_bin = g_bin.T
    # Fold Pool's tiny affine params (feature/structure/final projections + biases)
    # into one lane-dense feature row and one per-node structural bias:
    #   scores = sigmoid( h_new @ (w_feat*wf) + [ C @ (w_struct*ws) + b_eff ] )
    w_feat = pool_p["wfin"][0, 0]
    w_struct = pool_p["wfin"][1, 0]
    wf_eff = (w_feat * pool_p["wf"]).reshape(1, D)                          # (1, D)
    b_eff = w_feat * pool_p["bf"] + w_struct * pool_p["bs"] + pool_p["bfin"]
    struct_bias = (c @ (w_struct * pool_p["ws"]) + b_eff).reshape(1, N)     # (1, N)

    tm = _row_tile(N)
    h_new, reach, scores = pl.pallas_call(
        down_level_kernel,
        grid=(N // tm,),
        in_specs=[
            pl.BlockSpec((tm, N), lambda i: (i, 0)),   # A_bin^T row tile (GIN agg)
            pl.BlockSpec((N, N), lambda i: (0, 0)),    # A_bin full (reach3 RHS)
            pl.BlockSpec((N, D), lambda i: (0, 0)),    # h full
            pl.BlockSpec((D, D), lambda i: (0, 0)),    # w1
            pl.BlockSpec((1, D), lambda i: (0, 0)),    # b1
            pl.BlockSpec((D, D), lambda i: (0, 0)),    # w2
            pl.BlockSpec((1, D), lambda i: (0, 0)),    # b2
            pl.BlockSpec((1, D), lambda i: (0, 0)),    # wf_eff
            pl.BlockSpec((1, tm), lambda i: (0, i)),   # struct_bias tile
        ],
        out_specs=(
            pl.BlockSpec((tm, D), lambda i: (i, 0)),   # h_new
            pl.BlockSpec((tm, N), lambda i: (i, 0)),   # reach3
            pl.BlockSpec((1, tm), lambda i: (0, i)),   # scores (lane-dense)
        ),
        out_shape=(
            jax.ShapeDtypeStruct((N, D), jnp.float32),
            jax.ShapeDtypeStruct((N, N), jnp.float32),
            jax.ShapeDtypeStruct((1, N), jnp.float32),
        ),
        compiler_params=_COMPILER_PARAMS,
    )(gT_bin, g_bin, h, gcn_p["w1"], gcn_p["b1"], gcn_p["w2"], gcn_p["b2"],
      wf_eff, struct_bias)
    return h_new, reach, scores[0]


# ------------------------- host-side graph glue -----------------------------
# TODO(synk): networkx centralities (closeness/degree/betweenness/load/subgraph/
# harmonic) have no Pallas equivalent; re-implemented on the host with NumPy on
# the binary undirected adjacency (load centrality approximated by betweenness).
# TODO(synk): this forces a per-level device->host sync; for non-toy graphs the
# centralities should be computed asynchronously / overlapped with device work.

def _apsp_unweighted(a):
    n = a.shape[0]
    INF = 1e9
    d = np.where(a > 0, 1.0, INF)
    np.fill_diagonal(d, 0.0)
    for k in range(n):
        d = np.minimum(d, d[:, k:k + 1] + d[k:k + 1, :])
    return d, INF


def _betweenness(a):
    n = a.shape[0]
    bc = np.zeros(n)
    nbrs = [np.nonzero(a[v])[0] for v in range(n)]
    for s in range(n):
        S, P = [], [[] for _ in range(n)]
        sigma = np.zeros(n); sigma[s] = 1.0
        dist = np.full(n, -1); dist[s] = 0
        Q = [s]
        while Q:
            v = Q.pop(0); S.append(v)
            for w in nbrs[v]:
                if dist[w] < 0:
                    Q.append(w); dist[w] = dist[v] + 1
                if dist[w] == dist[v] + 1:
                    sigma[w] += sigma[v]; P[w].append(v)
        delta = np.zeros(n)
        while S:
            w = S.pop()
            for v in P[w]:
                delta[v] += sigma[v] / sigma[w] * (1.0 + delta[w])
            if w != s:
                bc[w] += delta[w]
    if n > 2:
        bc *= 1.0 / ((n - 1) * (n - 2))
    return bc


def all_centralities_np(g_np):
    n = g_np.shape[0]
    a = ((g_np > 0) | (g_np.T > 0)).astype(np.float64)
    np.fill_diagonal(a, 0.0)
    d, INF = _apsp_unweighted(a)
    c = np.zeros((n, 6), dtype=np.float64)
    for u in range(n):
        reach = (d[u] < INF)
        r = reach.sum() - 1
        tot = d[u][reach].sum()
        c[u, 0] = (r / tot) * (r / max(n - 1, 1)) if (tot > 0 and n > 1) else 0.0  # closeness
        c[u, 5] = np.sum(1.0 / d[u][(d[u] > 0) & (d[u] < INF)])                    # harmonic
    c[:, 1] = a.sum(1) / max(n - 1, 1)                                             # degree
    bc = _betweenness(a)
    c[:, 2] = bc                                                                   # betweenness
    c[:, 3] = bc                                                                   # load (approx)
    vals, vecs = np.linalg.eigh(a)
    c[:, 4] = (vecs ** 2) @ np.exp(vals)                                           # subgraph
    return c.astype(np.float32)


def norm_g(g):
    # NOTE: bug-for-bug parity with PyTorch `g / torch.sum(g, 1)`: broadcasting
    # divides COLUMN j by degrees[j] (not row-normalization).  Zero-degree rows
    # are guarded to avoid inf/NaN (reach3 diagonal is 1 for non-isolated nodes,
    # so this only differs from PyTorch on degenerate isolated-node inputs).
    degrees = jnp.sum(g, axis=1)
    return g / jnp.where(degrees > 0, degrees, 1.0)


def top_k_graph(scores, reach, h, k):
    n = reach.shape[0]
    kk = max(2, int(k * n))
    values, idx = jax.lax.top_k(scores, kk)
    new_h = h[idx, :] * values[:, None]
    un_g = reach[idx, :][:, idx]          # reach3 already computed in the fused kernel
    return norm_g(un_g), new_h, idx


def unpool_forward(g, h, idx):
    # idx is always a subset of range(g.shape[0]) -> the PyTorch "idx_prime" loop is empty.
    new_h = jnp.zeros((g.shape[0], h.shape[1]), dtype=h.dtype).at[idx].set(h)
    return g, new_h


# ------------------------------ GraphUnet -----------------------------------

def graph_unet_forward(g, h, params, ks):
    adj_ms, indices_list, down_outs, hs = [], [], [], []
    org_h = h
    l_n = len(ks)
    for i in range(l_n):
        c = jnp.asarray(all_centralities_np(np.asarray(g)), dtype=jnp.float32)
        h_new, reach, scores = down_level_forward(
            g, h, params["down"][i], params["pool"][i], c)
        adj_ms.append(g)
        down_outs.append(h_new)
        g, h, idx = top_k_graph(scores, reach, h_new, ks[i])
        indices_list.append(idx)
    h = gcn_forward(g, h, params["bottom"])
    for i in range(l_n):
        up_idx = l_n - i - 1
        g, idx = adj_ms[up_idx], indices_list[up_idx]
        g, h = unpool_forward(g, h, idx)
        h = gcn_forward(g, h, params["up"][i])
        h = h + down_outs[up_idx]
        hs.append(h)
    h = h + org_h
    hs.append(h)
    return hs


# ---------------------------- parameter setup -------------------------------

def init_gcn_params(key, dim):
    k1, k2, k3, k4 = jax.random.split(key, 4)
    return {
        "w1": 0.1 * jax.random.normal(k1, (dim, dim), jnp.float32),   # (in, out)
        "b1": 0.1 * jax.random.normal(k2, (1, dim), jnp.float32),
        "w2": 0.1 * jax.random.normal(k3, (dim, dim), jnp.float32),
        "b2": 0.1 * jax.random.normal(k4, (1, dim), jnp.float32),
    }


def init_pool_params(key, dim):
    k1, k2, k3, k4, k5, k6 = jax.random.split(key, 6)
    return {
        "wf": 0.1 * jax.random.normal(k1, (dim, 1), jnp.float32),
        "bf": 0.1 * jax.random.normal(k2, (1, 1), jnp.float32),
        "ws": 0.1 * jax.random.normal(k3, (6, 1), jnp.float32),
        "bs": 0.1 * jax.random.normal(k4, (1, 1), jnp.float32),
        "wfin": 0.1 * jax.random.normal(k5, (2, 1), jnp.float32),
        "bfin": 0.1 * jax.random.normal(k6, (1, 1), jnp.float32),
    }


def init_graph_unet_params(key, ks, dim):
    l_n = len(ks)
    keys = jax.random.split(key, 3 * l_n + 1)
    params = {
        "down": [init_gcn_params(keys[i], dim) for i in range(l_n)],
        "up": [init_gcn_params(keys[l_n + i], dim) for i in range(l_n)],
        "pool": [init_pool_params(keys[2 * l_n + i], dim) for i in range(l_n)],
        "bottom": init_gcn_params(keys[-1], dim),
    }
    return params


# --------------------------------- main --------------------------------------

if __name__ == "__main__":
    N, dim = 16, 32
    ks = [0.8, 0.6]

    key = jax.random.PRNGKey(0)
    kg, kh, kp = jax.random.split(key, 3)

    # symmetric binary adjacency with a ring (so the graph is connected), no self loops
    rand = jax.random.uniform(kg, (N, N))
    adj = ((rand + rand.T) > 1.3).astype(jnp.float32)
    ring = jnp.zeros((N, N), jnp.float32)
    idx_r = jnp.arange(N)
    ring = ring.at[idx_r, (idx_r + 1) % N].set(1.0)
    ring = jnp.maximum(ring, ring.T)
    g = jnp.maximum(adj, ring) * (1.0 - jnp.eye(N, dtype=jnp.float32))

    h = jax.random.normal(kh, (N, dim), jnp.float32)

    params = init_graph_unet_params(kp, ks, dim)

    hs = graph_unet_forward(g, h, params, ks)
    for out in hs:
        jax.block_until_ready(out)
    assert all(bool(jnp.all(jnp.isfinite(o))) for o in hs)
    print("KERNEL_OK")
</pallas_src>

<mosaic_0001>
module attributes {stable_mosaic.version = 11 : i64} {
  func.func @down_level_kernel(%arg0: i32, %arg1: memref<16x16xbf16, #tpu.memory_space<vmem>>, %arg2: memref<16x16xbf16, #tpu.memory_space<vmem>>, %arg3: memref<16x32xf32, #tpu.memory_space<vmem>>, %arg4: memref<32x32xf32, #tpu.memory_space<vmem>>, %arg5: memref<1x32xf32, #tpu.memory_space<vmem>>, %arg6: memref<32x32xf32, #tpu.memory_space<vmem>>, %arg7: memref<1x32xf32, #tpu.memory_space<vmem>>, %arg8: memref<1x32xf32, #tpu.memory_space<vmem>>, %arg9: memref<1x16xf32, #tpu.memory_space<vmem>>, %arg10: memref<16x32xf32, #tpu.memory_space<vmem>>, %arg11: memref<16x16xf32, #tpu.memory_space<vmem>>, %arg12: memref<1x16xf32, #tpu.memory_space<vmem>>) attributes {dimension_semantics = [#tpu.dimension_semantics<parallel>], iteration_bounds = array<i64: 1>, scalar_prefetch = 0 : i64, scratch_operands = 0 : i64, tpu.core_type = #tpu.core_type<tc>, window_params = [{transform_indices = @transform_0, window_bounds = array<i64: 16, 16>}, {pipeline_mode = #tpu.pipeline_mode<synchronous>, transform_indices = @transform_1, window_bounds = array<i64: 16, 16>}, {pipeline_mode = #tpu.pipeline_mode<synchronous>, transform_indices = @transform_2, window_bounds = array<i64: 16, 32>}, {pipeline_mode = #tpu.pipeline_mode<synchronous>, transform_indices = @transform_3, window_bounds = array<i64: 32, 32>}, {pipeline_mode = #tpu.pipeline_mode<synchronous>, transform_indices = @transform_4, window_bounds = array<i64: 1, 32>}, {pipeline_mode = #tpu.pipeline_mode<synchronous>, transform_indices = @transform_5, window_bounds = array<i64: 32, 32>}, {pipeline_mode = #tpu.pipeline_mode<synchronous>, transform_indices = @transform_6, window_bounds = array<i64: 1, 32>}, {pipeline_mode = #tpu.pipeline_mode<synchronous>, transform_indices = @transform_7, window_bounds = array<i64: 1, 32>}, {transform_indices = @transform_8, window_bounds = array<i64: 1, 16>}, {transform_indices = @transform_9, window_bounds = array<i64: 16, 32>}, {transform_indices = @transform_10, window_bounds = array<i64: 16, 16>}, {transform_indices = @transform_11, window_bounds = array<i64: 1, 16>}]} {
    %c16_i32 = arith.constant 16 : i32
    %0 = arith.muli %arg0, %c16_i32 : i32
    %1 = tpu.assume_multiple %0, 8 : i32
    %c0 = arith.constant 0 : index
    %c0_0 = arith.constant 0 : index
    %2 = vector.load %arg3[%c0, %c0_0] : memref<16x32xf32, #tpu.memory_space<vmem>>, vector<16x32xf32>
    %3 = arith.index_cast %1 : i32 to index
    %c0_1 = arith.constant 0 : index
    %4 = vector.load %arg3[%3, %c0_1] : memref<16x32xf32, #tpu.memory_space<vmem>>, vector<16x32xf32>
    %c0_2 = arith.constant 0 : index
    %c0_3 = arith.constant 0 : index
    %5 = vector.load %arg1[%c0_2, %c0_3] : memref<16x16xbf16, #tpu.memory_space<vmem>>, vector<16x16xbf16>
    %6 = arith.truncf %2 : vector<16x32xf32> to vector<16x32xbf16>
    %cst = arith.constant dense<0.000000e+00> : vector<16x32xf32>
    %7 = tpu.matmul %5, %6, %cst {dimension_numbers = #tpu.dot_dimension_numbers<[1], [0], [0], [1], [0, 0, 1, 1], [], []>} : vector<16x16xbf16>, vector<16x32xbf16>, vector<16x32xf32> -> vector<16x32xf32>
    %8 = arith.addf %4, %7 : vector<16x32xf32>
    %9 = arith.truncf %8 : vector<16x32xf32> to vector<16x32xbf16>
    %c0_4 = arith.constant 0 : index
    %c0_5 = arith.constant 0 : index
    %10 = vector.load %arg4[%c0_4, %c0_5] : memref<32x32xf32, #tpu.memory_space<vmem>>, vector<32x32xf32>
    %11 = arith.truncf %10 : vector<32x32xf32> to vector<32x32xbf16>
    %cst_6 = arith.constant dense<0.000000e+00> : vector<16x32xf32>
    %12 = tpu.matmul %9, %11, %cst_6 {dimension_numbers = #tpu.dot_dimension_numbers<[1], [0], [0], [1], [0, 0, 1, 1], [], []>} : vector<16x32xbf16>, vector<32x32xbf16>, vector<16x32xf32> -> vector<16x32xf32>
    %c0_7 = arith.constant 0 : index
    %c0_8 = arith.constant 0 : index
    %13 = vector.load %arg5[%c0_7, %c0_8] : memref<1x32xf32, #tpu.memory_space<vmem>>, vector<1x32xf32>
    %14 = vector.broadcast %13 : vector<1x32xf32> to vector<16x32xf32>
    %15 = arith.addf %12, %14 : vector<16x32xf32>
    %cst_9 = arith.constant 0.000000e+00 : f32
    %16 = vector.broadcast %cst_9 : f32 to vector<16x32xf32>
    %17 = arith.maximumf %15, %16 : vector<16x32xf32>
    %18 = arith.truncf %17 : vector<16x32xf32> to vector<16x32xbf16>
    %c0_10 = arith.constant 0 : index
    %c0_11 = arith.constant 0 : index
    %19 = vector.load %arg6[%c0_10, %c0_11] : memref<32x32xf32, #tpu.memory_space<vmem>>, vector<32x32xf32>
    %20 = arith.truncf %19 : vector<32x32xf32> to vector<32x32xbf16>
    %cst_12 = arith.constant dense<0.000000e+00> : vector<16x32xf32>
    %21 = tpu.matmul %18, %20, %cst_12 {dimension_numbers = #tpu.dot_dimension_numbers<[1], [0], [0], [1], [0, 0, 1, 1], [], []>} : vector<16x32xbf16>, vector<32x32xbf16>, vector<16x32xf32> -> vector<16x32xf32>
    %c0_13 = arith.constant 0 : index
    %c0_14 = arith.constant 0 : index
    %22 = vector.load %arg7[%c0_13, %c0_14] : memref<1x32xf32, #tpu.memory_space<vmem>>, vector<1x32xf32>
    %23 = vector.broadcast %22 : vector<1x32xf32> to vector<16x32xf32>
    %24 = arith.addf %21, %23 : vector<16x32xf32>
    %cst_15 = arith.constant 0.000000e+00 : f32
    %25 = vector.broadcast %cst_15 : f32 to vector<16x32xf32>
    %26 = arith.maximumf %24, %25 : vector<16x32xf32>
    %c0_16 = arith.constant 0 : index
    %c0_17 = arith.constant 0 : index
    %27 = vector.load %arg10[%c0_16, %c0_17] : memref<16x32xf32, #tpu.memory_space<vmem>>, vector<16x32xf32>
    tpu.vector_store %arg10[%c0_16, %c0_17], %26 {strides = array<i32>} : memref<16x32xf32, #tpu.memory_space<vmem>>, vector<16x32xf32>,
    %c0_18 = arith.constant 0 : index
    %c0_19 = arith.constant 0 : index
    %28 = vector.load %arg8[%c0_18, %c0_19] : memref<1x32xf32, #tpu.memory_space<vmem>>, vector<1x32xf32>
    %cst_20 = arith.constant dense<0.000000e+00> : vector<1x16xf32>
    %29 = tpu.matmul %28, %26, %cst_20 {dimension_numbers = #tpu.dot_dimension_numbers<[1], [1], [0], [0], [0, 0, 1, 0], [], []>} : vector<1x32xf32>, vector<16x32xf32>, vector<1x16xf32> -> vector<1x16xf32>
    %c0_21 = arith.constant 0 : index
    %c0_22 = arith.constant 0 : index
    %30 = vector.load %arg9[%c0_21, %c0_22] : memref<1x16xf32, #tpu.memory_space<vmem>>, vector<1x16xf32>
    %31 = arith.addf %29, %30 : vector<1x16xf32>
    %32 = arith.negf %31 : vector<1x16xf32>
    %33 = math.exp %32 : vector<1x16xf32>
    %cst_23 = arith.constant 1.000000e+00 : f32
    %34 = vector.broadcast %cst_23 : f32 to vector<1x16xf32>
    %35 = arith.addf %34, %33 : vector<1x16xf32>
    %36 = arith.divf %34, %35 : vector<1x16xf32>
    %c0_24 = arith.constant 0 : index
    %c0_25 = arith.constant 0 : index
    %37 = vector.load %arg12[%c0_24, %c0_25] : memref<1x16xf32, #tpu.memory_space<vmem>>, vector<1x16xf32>
    tpu.vector_store %arg12[%c0_24, %c0_25], %36 {strides = array<i32>} : memref<1x16xf32, #tpu.memory_space<vmem>>, vector<1x16xf32>,
    %c0_26 = arith.constant 0 : index
    %c0_27 = arith.constant 0 : index
    %38 = vector.load %arg2[%c0_26, %c0_27] : memref<16x16xbf16, #tpu.memory_space<vmem>>, vector<16x16xbf16>
    %39 = arith.index_cast %1 : i32 to index
    %c0_28 = arith.constant 0 : index
    %40 = vector.load %arg2[%39, %c0_28] : memref<16x16xbf16, #tpu.memory_space<vmem>>, vector<16x16xbf16>
    %cst_29 = arith.constant dense<0.000000e+00> : vector<16x16xf32>
    %41 = tpu.matmul %40, %38, %cst_29 {dimension_numbers = #tpu.dot_dimension_numbers<[1], [0], [0], [1], [0, 0, 1, 1], [], []>} : vector<16x16xbf16>, vector<16x16xbf16>, vector<16x16xf32> -> vector<16x16xf32>
    %42 = arith.truncf %41 : vector<16x16xf32> to vector<16x16xbf16>
    %cst_30 = arith.constant dense<0.000000e+00> : vector<16x16xf32>
    %43 = tpu.matmul %42, %38, %cst_30 {dimension_numbers = #tpu.dot_dimension_numbers<[1], [0], [0], [1], [0, 0, 1, 1], [], []>} : vector<16x16xbf16>, vector<16x16xbf16>, vector<16x16xf32> -> vector<16x16xf32>
    %44 = arith.extf %40 : vector<16x16xbf16> to vector<16x16xf32>
    %45 = arith.addf %44, %41 : vector<16x16xf32>
    %46 = arith.addf %45, %43 : vector<16x16xf32>
    %cst_31 = arith.constant 0.000000e+00 : f32
    %47 = vector.broadcast %cst_31 : f32 to vector<16x16xf32>
    %48 = arith.cmpf ogt, %46, %47 : vector<16x16xf32>
    %49 = arith.extui %48 : vector<16x16xi1> to vector<16x16xi32>
    %50 = arith.sitofp %49 : vector<16x16xi32> to vector<16x16xf32>
    %c0_32 = arith.constant 0 : index
    %c0_33 = arith.constant 0 : index
    %51 = vector.load %arg11[%c0_32, %c0_33] : memref<16x16xf32, #tpu.memory_space<vmem>>, vector<16x16xf32>
    tpu.vector_store %arg11[%c0_32, %c0_33], %50 {strides = array<i32>} : memref<16x16xf32, #tpu.memory_space<vmem>>, vector<16x16xf32>,
    return
  }
  func.func @transform_0(%arg0: i32) -> (i32, i32) {
    %c0_i32 = arith.constant 0 : i32
    %c0_i32_0 = arith.constant 0 : i32
    return %arg0, %c0_i32 : i32, i32
  }
  func.func @transform_1(%arg0: i32) -> (i32, i32) {
    %c0_i32 = arith.constant 0 : i32
    %c0_i32_0 = arith.constant 0 : i32
    %c0_i32_1 = arith.constant 0 : i32
    return %c0_i32, %c0_i32_0 : i32, i32
  }
  func.func @transform_2(%arg0: i32) -> (i32, i32) {
    %c0_i32 = arith.constant 0 : i32
    %c0_i32_0 = arith.constant 0 : i32
    %c0_i32_1 = arith.constant 0 : i32
    return %c0_i32, %c0_i32_0 : i32, i32
  }
  func.func @transform_3(%arg0: i32) -> (i32, i32) {
    %c0_i32 = arith.constant 0 : i32
    %c0_i32_0 = arith.constant 0 : i32
    %c0_i32_1 = arith.constant 0 : i32
    return %c0_i32, %c0_i32_0 : i32, i32
  }
  func.func @transform_4(%arg0: i32) -> (i32, i32) {
    %c0_i32 = arith.constant 0 : i32
    %c0_i32_0 = arith.constant 0 : i32
    %c0_i32_1 = arith.constant 0 : i32
    return %c0_i32, %c0_i32_0 : i32, i32
  }
  func.func @transform_5(%arg0: i32) -> (i32, i32) {
    %c0_i32 = arith.constant 0 : i32
    %c0_i32_0 = arith.constant 0 : i32
    %c0_i32_1 = arith.constant 0 : i32
    return %c0_i32, %c0_i32_0 : i32, i32
  }
  func.func @transform_6(%arg0: i32) -> (i32, i32) {
    %c0_i32 = arith.constant 0 : i32
    %c0_i32_0 = arith.constant 0 : i32
    %c0_i32_1 = arith.constant 0 : i32
    return %c0_i32, %c0_i32_0 : i32, i32
  }
  func.func @transform_7(%arg0: i32) -> (i32, i32) {
    %c0_i32 = arith.constant 0 : i32
    %c0_i32_0 = arith.constant 0 : i32
    %c0_i32_1 = arith.constant 0 : i32
    return %c0_i32, %c0_i32_0 : i32, i32
  }
  func.func @transform_8(%arg0: i32) -> (i32, i32) {
    %c0_i32 = arith.constant 0 : i32
    %c0_i32_0 = arith.constant 0 : i32
    return %c0_i32, %arg0 : i32, i32
  }
  func.func @transform_9(%arg0: i32) -> (i32, i32) {
    %c0_i32 = arith.constant 0 : i32
    %c0_i32_0 = arith.constant 0 : i32
    return %arg0, %c0_i32 : i32, i32
  }
  func.func @transform_10(%arg0: i32) -> (i32, i32) {
    %c0_i32 = arith.constant 0 : i32
    %c0_i32_0 = arith.constant 0 : i32
    return %arg0, %c0_i32 : i32, i32
  }
  func.func @transform_11(%arg0: i32) -> (i32, i32) {
    %c0_i32 = arith.constant 0 : i32
    %c0_i32_0 = arith.constant 0 : i32
    return %c0_i32, %arg0 : i32, i32
  }
}

</mosaic_0001>

<llo_original>
// kernel: tpu_custom_call.1
$region0: #{tpu_custom_call.1}
  #allocation0 [shape = 'u32[]', space=smem, size = 0x4, offset = 0x4, fixed_abs, tag = 'smem constant byte address 0x4 - core index']
  #allocation1 [shape = 'u32[144,128]{1,0:T(1,128)}', space=vmem, size = 0x12000, scoped, tag = 'internal scratch']
  %s0 = inlined_call_operand.hbm [shape: bf16[16,16], index: 0, kind: input, shape index: {}]
  %s1 = inlined_call_operand.hbm [shape: bf16[16,16], index: 1, kind: input, shape index: {}]
  %s2 = inlined_call_operand.hbm [shape: f32[16,32], index: 2, kind: input, shape index: {}]
  %s3 = inlined_call_operand.hbm [shape: f32[32,32], index: 3, kind: input, shape index: {}]
  %s4 = inlined_call_operand.hbm [shape: f32[1,32], index: 4, kind: input, shape index: {}]
  %s5 = inlined_call_operand.hbm [shape: f32[32,32], index: 5, kind: input, shape index: {}]
  %s6 = inlined_call_operand.hbm [shape: f32[1,32], index: 6, kind: input, shape index: {}]
  %s7 = inlined_call_operand.hbm [shape: f32[1,32], index: 7, kind: input, shape index: {}]
  %s8 = inlined_call_operand.hbm [shape: f32[1,16], index: 8, kind: input, shape index: {}]
  %s9 = inlined_call_operand.hbm [shape: f32[16,32], index: 9, kind: output, shape index: {0}]
  %s10 = inlined_call_operand.hbm [shape: f32[16,16], index: 10, kind: output, shape index: {1}]
  %s11 = inlined_call_operand.hbm [shape: f32[1,16], index: 11, kind: output, shape index: {2}]
  %12 = xla_tuple %s9, %s10, %s11
  %s13 = sld [smem:[#allocation0]]
  $region98: #{tpu_custom_call.1} parent=0
    _
  %s15 = ssub.s32 1, %s13
  %s16 = scalar_select 0, %s15, %s13
  $region1: #{tpu_custom_call.1} parent=0
    #allocation2 [shape = 'u8[4096]{0}', space=vmem, size = 0x1000, scoped, tag = 'input window, operand 0, single buffered']
    #allocation3 [shape = 's32[1]{0}', space=sflag, size = 0x4, scoped, tag = 'scoped memory for tpu_custom_call.1']
    #allocation4 [shape = 's32[1]{0}', space=sflag, size = 0x4, scoped, tag = 'scoped memory for tpu_custom_call.1']
    #allocation5 [shape = 'u8[4096]{0}', space=vmem, size = 0x1000, scoped, tag = 'input window, operand 1, single buffered']
    #allocation6 [shape = 's32[1]{0}', space=sflag, size = 0x4, scoped, tag = 'scoped memory for tpu_custom_call.1']
    #allocation7 [shape = 'u8[8192]{0}', space=vmem, size = 0x2000, scoped, tag = 'input window, operand 2, single buffered']
    #allocation8 [shape = 'u8[16384]{0}', space=vmem, size = 0x4000, scoped, tag = 'input window, operand 3, single buffered']
    #allocation9 [shape = 's32[1]{0}', space=sflag, size = 0x4, scoped, tag = 'scoped memory for tpu_custom_call.1']
    #allocation10 [shape = 'u8[512]{0}', space=vmem, size = 0x400, scoped, tag = 'input window, operand 4, single buffered']
    #allocation11 [shape = 'u8[16384]{0}', space=vmem, size = 0x4000, scoped, tag = 'input window, operand 5, single buffered']
    #allocation12 [shape = 's32[1]{0}', space=sflag, size = 0x4, scoped, tag = 'scoped memory for tpu_custom_call.1']
    #allocation13 [shape = 'u8[512]{0}', space=vmem, size = 0x400, scoped, tag = 'input window, operand 6, single buffered']
    #allocation14 [shape = 'u8[512]{0}', space=vmem, size = 0x400, scoped, tag = 'input window, operand 7, single buffered']
    #allocation15 [shape = 's32[1]{0}', space=sflag, size = 0x4, scoped, tag = 'scoped memory for tpu_custom_call.1']
    #allocation16 [shape = 'u8[512]{0}', space=vmem, size = 0x400, scoped, tag = 'input window, operand 8, single buffered']
    #allocation17 [shape = 'u8[8192]{0}', space=vmem, size = 0x2000, scoped, tag = 'output window, operand 0, single buffered']
    #allocation18 [shape = 'u8[8192]{0}', space=vmem, size = 0x2000, scoped, tag = 'output window, operand 1, single buffered']
    #allocation19 [shape = 's32[1]{0}', space=sflag, size = 0x4, scoped, tag = 'scoped memory for tpu_custom_call.1']
    #allocation20 [shape = 'u8[512]{0}', space=vmem, size = 0x400, scoped, tag = 'output window, operand 2, single buffered']
    %17 = vsyncpa [#allocation3], 0
    %18 = vsyncpa [#allocation6], 0
    %19 = vsyncpa [#allocation9], 0
    %20 = vsyncpa [#allocation12], 0
    %21 = vsyncpa [#allocation15], 0
    %22 = vsyncpa [#allocation4], 0
    %23 = vsyncpa [#allocation19], 0
    // Predicated region
    $region2: #{tpu_custom_call.1} parent=1 // pred_check
      _
    $region3: #{tpu_custom_call.1} parent=1 // pred_check_branch
      %25 = sbr.rel (0) target = $region5
    $region4: #{tpu_custom_call.1} parent=1 // pred_region
      %s27 = ssub.s32 128, 128
      %28 = vsyncadd [#allocation3], %s27
      %s29 = sshll.u32 [#allocation2], 4
      %s30 = int_to_ptr.vmem [resolvable:$true] %s29
      %35 = dma.hbm_to_vmem [thread:$0]  %s0, 128, %s30, [#allocation3], 64, 64, 4
    $region5: #{tpu_custom_call.1} parent=1 // pred_fallthru
      _
    // Predicated region
    $region6: #{tpu_custom_call.1} parent=1 // pred_check
      _
    $region7: #{tpu_custom_call.1} parent=1 // pred_check_branch
      %37 = sbr.rel (0) target = $region9
    $region8: #{tpu_custom_call.1} parent=1 // pred_region
      %s39 = ssub.s32 128, 128
      %40 = vsyncadd [#allocation6], %s39
      %s41 = sshll.u32 [#allocation5], 4
      %s42 = int_to_ptr.vmem [resolvable:$true] %s41
      %47 = dma.hbm_to_vmem [thread:$0]  %s1, 128, %s42, [#allocation6], 64, 64, 4
    $region9: #{tpu_custom_call.1} parent=1 // pred_fallthru
      _
    // Predicated region
    $region10: #{tpu_custom_call.1} parent=1 // pred_check
      _
    $region11: #{tpu_custom_call.1} parent=1 // pred_check_branch
      %49 = sbr.rel (0) target = $region13
    $region12: #{tpu_custom_call.1} parent=1 // pred_region
      %s51 = ssub.s32 256, 256
      %52 = vsyncadd [#allocation6], %s51
      %s53 = sshll.u32 [#allocation7], 4
      %s54 = int_to_ptr.vmem [resolvable:$true] %s53
      %59 = dma.hbm_to_vmem [thread:$0]  %s2, 256, %s54, [#allocation6], 128, 128, 8
    $region13: #{tpu_custom_call.1} parent=1 // pred_fallthru
      _
    // Predicated region
    $region14: #{tpu_custom_call.1} parent=1 // pred_check
      _
    $region15: #{tpu_custom_call.1} parent=1 // pred_check_branch
      %61 = sbr.rel (0) target = $region17
    $region16: #{tpu_custom_call.1} parent=1 // pred_region
      %s63 = ssub.s32 512, 512
      %64 = vsyncadd [#allocation9], %s63
      %s65 = sshll.u32 [#allocation8], 4
      %s66 = int_to_ptr.vmem [resolvable:$true] %s65
      %71 = dma.hbm_to_vmem [thread:$0]  %s3, 512, %s66, [#allocation9], 128, 128, 8
    $region17: #{tpu_custom_call.1} parent=1 // pred_fallthru
      _
    // Predicated region
    $region18: #{tpu_custom_call.1} parent=1 // pred_check
      _
    $region19: #{tpu_custom_call.1} parent=1 // pred_check_branch
      %73 = sbr.rel (0) target = $region21
    $region20: #{tpu_custom_call.1} parent=1 // pred_region
      %s75 = ssub.s32 16, 16
      %76 = vsyncadd [#allocation9], %s75
      %s78 = sshll.u32 [#allocation10], 4
      %s79 = int_to_ptr.vmem [resolvable:$true] %s78
      %81 = dma.hbm_to_vmem [thread:$0]  %s4, 16, %s79, [#allocation9]
    $region21: #{tpu_custom_call.1} parent=1 // pred_fallthru
      _
    // Predicated region
    $region22: #{tpu_custom_call.1} parent=1 // pred_check
      _
    $region23: #{tpu_custom_call.1} parent=1 // pred_check_branch
      %83 = sbr.rel (0) target = $region25
    $region24: #{tpu_custom_call.1} parent=1 // pred_region
      %s85 = ssub.s32 512, 512
      %86 = vsyncadd [#allocation12], %s85
      %s87 = sshll.u32 [#allocation11], 4
      %s88 = int_to_ptr.vmem [resolvable:$true] %s87
      %93 = dma.hbm_to_vmem [thread:$0]  %s5, 512, %s88, [#allocation12], 128, 128, 8
    $region25: #{tpu_custom_call.1} parent=1 // pred_fallthru
      _
    // Predicated region
    $region26: #{tpu_custom_call.1} parent=1 // pred_check
      _
    $region27: #{tpu_custom_call.1} parent=1 // pred_check_branch
      %95 = sbr.rel (0) target = $region29
    $region28: #{tpu_custom_call.1} parent=1 // pred_region
      %s97 = ssub.s32 16, 16
      %98 = vsyncadd [#allocation12], %s97
      %s100 = sshll.u32 [#allocation13], 4
      %s101 = int_to_ptr.vmem [resolvable:$true] %s100
      %103 = dma.hbm_to_vmem [thread:$0]  %s6, 16, %s101, [#allocation12]
    $region29: #{tpu_custom_call.1} parent=1 // pred_fallthru
      _
    // Predicated region
    $region30: #{tpu_custom_call.1} parent=1 // pred_check
      _
    $region31: #{tpu_custom_call.1} parent=1 // pred_check_branch
      %105 = sbr.rel (0) target = $region33
    $region32: #{tpu_custom_call.1} parent=1 // pred_region
      %s107 = ssub.s32 16, 16
      %108 = vsyncadd [#allocation15], %s107
      %s110 = sshll.u32 [#allocation14], 4
      %s111 = int_to_ptr.vmem [resolvable:$true] %s110
      %113 = dma.hbm_to_vmem [thread:$0]  %s7, 16, %s111, [#allocation15]
    $region33: #{tpu_custom_call.1} parent=1 // pred_fallthru
      _
    // Predicated region
    $region34: #{tpu_custom_call.1} parent=1 // pred_check
      _
    $region35: #{tpu_custom_call.1} parent=1 // pred_check_branch
      %115 = sbr.rel (0) target = $region37
    $region36: #{tpu_custom_call.1} parent=1 // pred_region
      %s117 = ssub.s32 16, 16
      %118 = vsyncadd [#allocation15], %s117
      %s120 = sshll.u32 [#allocation16], 4
      %s121 = int_to_ptr.vmem [resolvable:$true] %s120
      %123 = dma.hbm_to_vmem [thread:$0]  %s8, 16, %s121, [#allocation15]
    $region37: #{tpu_custom_call.1} parent=1 // pred_fallthru
      _
    // Predicated region
    $region38: #{tpu_custom_call.1} parent=1 // pred_check
      _
    $region39: #{tpu_custom_call.1} parent=1 // pred_check_branch
      %125 = sbr.rel (0) target = $region41
    $region40: #{tpu_custom_call.1} parent=1 // pred_region
      %126 = dma.done [#allocation3], 128
    $region41: #{tpu_custom_call.1} parent=1 // pred_fallthru
      _
    // Predicated region
    $region42: #{tpu_custom_call.1} parent=1 // pred_check
      _
    $region43: #{tpu_custom_call.1} parent=1 // pred_check_branch
      %128 = sbr.rel (0) target = $region45
    $region44: #{tpu_custom_call.1} parent=1 // pred_region
      %129 = dma.done [#allocation6], 128
    $region45: #{tpu_custom_call.1} parent=1 // pred_fallthru
      _
    // Predicated region
    $region46: #{tpu_custom_call.1} parent=1 // pred_check
      _
    $region47: #{tpu_custom_call.1} parent=1 // pred_check_branch
      %131 = sbr.rel (0) target = $region49
    $region48: #{tpu_custom_call.1} parent=1 // pred_region
      %132 = dma.done [#allocation6], 256
    $region49: #{tpu_custom_call.1} parent=1 // pred_fallthru
      _
    // Predicated region
    $region50: #{tpu_custom_call.1} parent=1 // pred_check
      _
    $region51: #{tpu_custom_call.1} parent=1 // pred_check_branch
      %134 = sbr.rel (0) target = $region53
    $region52: #{tpu_custom_call.1} parent=1 // pred_region
      %135 = dma.done [#allocation9], 512
    $region53: #{tpu_custom_call.1} parent=1 // pred_fallthru
      _
    // Predicated region
    $region54: #{tpu_custom_call.1} parent=1 // pred_check
      _
    $region55: #{tpu_custom_call.1} parent=1 // pred_check_branch
      %137 = sbr.rel (0) target = $region57
    $region56: #{tpu_custom_call.1} parent=1 // pred_region
      %138 = dma.done [#allocation9], 16
    $region57: #{tpu_custom_call.1} parent=1 // pred_fallthru
      _
    // Predicated region
    $region58: #{tpu_custom_call.1} parent=1 // pred_check
      _
    $region59: #{tpu_custom_call.1} parent=1 // pred_check_branch
      %140 = sbr.rel (0) target = $region61
    $region60: #{tpu_custom_call.1} parent=1 // pred_region
      %141 = dma.done [#allocation12], 512
    $region61: #{tpu_custom_call.1} parent=1 // pred_fallthru
      _
    // Predicated region
    $region62: #{tpu_custom_call.1} parent=1 // pred_check
      _
    $region63: #{tpu_custom_call.1} parent=1 // pred_check_branch
      %143 = sbr.rel (0) target = $region65
    $region64: #{tpu_custom_call.1} parent=1 // pred_region
      %144 = dma.done [#allocation12], 16
    $region65: #{tpu_custom_call.1} parent=1 // pred_fallthru
      _
    // Predicated region
    $region66: #{tpu_custom_call.1} parent=1 // pred_check
      _
    $region67: #{tpu_custom_call.1} parent=1 // pred_check_branch
      %146 = sbr.rel (0) target = $region69
    $region68: #{tpu_custom_call.1} parent=1 // pred_region
      %147 = dma.done [#allocation15], 16
    $region69: #{tpu_custom_call.1} parent=1 // pred_fallthru
      _
    // Predicated region
    $region70: #{tpu_custom_call.1} parent=1 // pred_check
      _
    $region71: #{tpu_custom_call.1} parent=1 // pred_check_branch
      %149 = sbr.rel (0) target = $region73
    $region72: #{tpu_custom_call.1} parent=1 // pred_region
      %150 = dma.done [#allocation15], 16
    $region73: #{tpu_custom_call.1} parent=1 // pred_fallthru
      _
    %s152 = smul.u32 0, 16
    %v153 = vld [vmem:[#allocation7] sm:$0xff]
    %v154 = vld [vmem:[#allocation7 + $0x8] sm:$0xff]
    %s155 = scalar_lea.vmem [#allocation7], %s152
    %v156 = vld [vmem:[%s155] sm:$0xff]
    %v157 = vld [vmem:[%s155 + $0x8] sm:$0xff]
    %v158 = vld [vmem:[#allocation2] sm:$0xf]
    %v159 = vld [vmem:[#allocation2 + $0x4] sm:$0xf]
    %v160 = vpack.c.bf16 %v154, %v153
    %v163 = vunpack.c.l.b16 %v158
    %v164 = vunpack.c.l.b16 %v159
    %v165 = vpack.c.b16 %v164, %v163
    %vm166 = vcmask 130048
    %v168 = vsel %vm166, %v165, 0
    %170 = vmatprep.subr.bf16.mxu0 0
    %171 = vmatpush1.bf16.msra.mxu0 %v160
    %172 = vmatprep.subr.bf16.mxu0 0
    %173 = vmatpush1.bf16.msra.mxu0 0
    %174 = vmatprep.subr.bf16.mxu0 0
    %175 = vmatpush1.bf16.msra.mxu0 0
    %176 = vmatprep.subr.bf16.mxu0 0
    %177 = vmatpush1.bf16.msra.mxu0 0
    %178 = vmatprep.subr.bf16.mxu0 0
    %179 = vmatpush1.bf16.msra.mxu0 0
    %180 = vmatprep.subr.bf16.mxu0 0
    %181 = vmatpush1.bf16.msra.mxu0 0
    %182 = vmatprep.subr.bf16.mxu0 0
    %183 = vmatpush1.bf16.msra.mxu0 0
    %184 = vmatprep.subr.bf16.mxu0 0
    %185 = vmatpush1.bf16.msra.mxu0 0
    %186 = vmatprep.subr.bf16.mxu0 0
    %187 = vmatpush1.bf16.msra.mxu0 0
    %188 = vmatprep.subr.bf16.mxu0 0
    %189 = vmatpush1.bf16.msra.mxu0 0
    %190 = vmatprep.subr.bf16.mxu0 0
    %191 = vmatpush1.bf16.msra.mxu0 0
    %192 = vmatprep.subr.bf16.mxu0 0
    %193 = vmatpush1.bf16.msra.mxu0 0
    %194 = vmatprep.subr.bf16.mxu0 0
    %195 = vmatpush1.bf16.msra.mxu0 0
    %196 = vmatprep.subr.bf16.mxu0 0
    %197 = vmatpush1.bf16.msra.mxu0 0
    %198 = vmatprep.subr.bf16.mxu0 0
    %199 = vmatpush1.bf16.msra.mxu0 0
    %200 = vmatprep.subr.bf16.mxu0 0
    %201 = vmatpush1.bf16.msra.mxu0 0
    %202 = vmatprep.mubr.bf16.mxu0 0
    %203 = vmatmul.mubr.bf16.gmra.mrb[0].mxu0 %v168
    %v204 = vpop.f32.mrb[0].mxu0
    %v205 = vadd.f32 0.0, %v204
    %v206 = vpop.f32.mrb[0].mxu0
    %v207 = vpop.f32.mrb[0].mxu0
    %v208 = vadd.f32 0.0, %v207
    %v209 = vpop.f32.mrb[0].mxu0
    %210 = vdwg.mxu0
    %v211 = vadd.f32 %v156, %v205
    %v212 = vadd.f32 %v157, %v208
    %v213 = vpack.c.bf16 %v212, %v211
    %v214 = vld [vmem:[#allocation8] sm:$0xff]
    %v215 = vld [vmem:[#allocation8 + $0x8] sm:$0xff]
    %v216 = vld [vmem:[#allocation8 + $0x10] sm:$0xff]
    %v217 = vld [vmem:[#allocation8 + $0x18] sm:$0xff]
    %v218 = vpack.c.bf16 %v215, %v214
    %v219 = vpack.c.bf16 %v217, %v216
    %v220 = vld [vmem:[#allocation10] sm:$0x1]
    %v222 = vlaneseq
    %v223 = vshrl.u32 %v222, 7
    %v224 = vsub.s32 0, %v223
    %v225 = vrot.slane %v220, %v224
    %vm227 = vcmask 261120
    %v229 = vsel %vm227, %v213, 0
    %231 = vmatprep.subr.bf16.mxu0 0
    %232 = vmatpush1.bf16.msra.mxu0 %v218
    %233 = vmatprep.subr.bf16.mxu0 0
    %234 = vmatpush1.bf16.msra.mxu0 %v219
    %235 = vmatprep.subr.bf16.mxu0 0
    %236 = vmatpush1.bf16.msra.mxu0 0
    %237 = vmatprep.subr.bf16.mxu0 0
    %238 = vmatpush1.bf16.msra.mxu0 0
    %239 = vmatprep.subr.bf16.mxu0 0
    %240 = vmatpush1.bf16.msra.mxu0 0
    %241 = vmatprep.subr.bf16.mxu0 0
    %242 = vmatpush1.bf16.msra.mxu0 0
    %243 = vmatprep.subr.bf16.mxu0 0
    %244 = vmatpush1.bf16.msra.mxu0 0
    %245 = vmatprep.subr.bf16.mxu0 0
    %246 = vmatpush1.bf16.msra.mxu0 0
    %247 = vmatprep.subr.bf16.mxu0 0
    %248 = vmatpush1.bf16.msra.mxu0 0
    %249 = vmatprep.subr.bf16.mxu0 0
    %250 = vmatpush1.bf16.msra.mxu0 0
    %251 = vmatprep.subr.bf16.mxu0 0
    %252 = vmatpush1.bf16.msra.mxu0 0
    %253 = vmatprep.subr.bf16.mxu0 0
    %254 = vmatpush1.bf16.msra.mxu0 0
    %255 = vmatprep.subr.bf16.mxu0 0
    %256 = vmatpush1.bf16.msra.mxu0 0
    %257 = vmatprep.subr.bf16.mxu0 0
    %258 = vmatpush1.bf16.msra.mxu0 0
    %259 = vmatprep.subr.bf16.mxu0 0
    %260 = vmatpush1.bf16.msra.mxu0 0
    %261 = vmatprep.subr.bf16.mxu0 0
    %262 = vmatpush1.bf16.msra.mxu0 0
    %263 = vmatprep.mubr.bf16.mxu0 0
    %264 = vmatmul.mubr.bf16.gmra.mrb[0].mxu0 %v229
    %v265 = vpop.f32.mrb[0].mxu0
    %v266 = vadd.f32 %v225, %v265
    %v267 = vpop.f32.mrb[0].mxu0
    %v268 = vpop.f32.mrb[0].mxu0
    %v269 = vadd.f32 %v225, %v268
    %v270 = vpop.f32.mrb[0].mxu0
    %271 = vdwg.mxu0
    %v272 = vmax.f32 %v266, 0.0
    %v273 = vmax.f32 %v269, 0.0
    %v274 = vpack.c.bf16 %v273, %v272
    %v275 = vld [vmem:[#allocation11] sm:$0xff]
    %v276 = vld [vmem:[#allocation11 + $0x8] sm:$0xff]
    %v277 = vld [vmem:[#allocation11 + $0x10] sm:$0xff]
    %v278 = vld [vmem:[#allocation11 + $0x18] sm:$0xff]
    %v279 = vpack.c.bf16 %v276, %v275
    %v280 = vpack.c.bf16 %v278, %v277
    %v281 = vld [vmem:[#allocation13] sm:$0x1]
    %v283 = vlaneseq
    %v284 = vshrl.u32 %v283, 7
    %v285 = vsub.s32 0, %v284
    %v286 = vrot.slane %v281, %v285
    %v289 = vsel %vm227, %v274, 0
    %291 = vmatprep.subr.bf16.mxu0 0
    %292 = vmatpush1.bf16.msra.mxu0 %v279
    %293 = vmatprep.subr.bf16.mxu0 0
    %294 = vmatpush1.bf16.msra.mxu0 %v280
    %295 = vmatprep.subr.bf16.mxu0 0
    %296 = vmatpush1.bf16.msra.mxu0 0
    %297 = vmatprep.subr.bf16.mxu0 0
    %298 = vmatpush1.bf16.msra.mxu0 0
    %299 = vmatprep.subr.bf16.mxu0 0
    %300 = vmatpush1.bf16.msra.mxu0 0
    %301 = vmatprep.subr.bf16.mxu0 0
    %302 = vmatpush1.bf16.msra.mxu0 0
    %303 = vmatprep.subr.bf16.mxu0 0
    %304 = vmatpush1.bf16.msra.mxu0 0
    %305 = vmatprep.subr.bf16.mxu0 0
    %306 = vmatpush1.bf16.msra.mxu0 0
    %307 = vmatprep.subr.bf16.mxu0 0
    %308 = vmatpush1.bf16.msra.mxu0 0
    %309 = vmatprep.subr.bf16.mxu0 0
    %310 = vmatpush1.bf16.msra.mxu0 0
    %311 = vmatprep.subr.bf16.mxu0 0
    %312 = vmatpush1.bf16.msra.mxu0 0
    %313 = vmatprep.subr.bf16.mxu0 0
    %314 = vmatpush1.bf16.msra.mxu0 0
    %315 = vmatprep.subr.bf16.mxu0 0
    %316 = vmatpush1.bf16.msra.mxu0 0
    %317 = vmatprep.subr.bf16.mxu0 0
    %318 = vmatpush1.bf16.msra.mxu0 0
    %319 = vmatprep.subr.bf16.mxu0 0
    %320 = vmatpush1.bf16.msra.mxu0 0
    %321 = vmatprep.subr.bf16.mxu0 0
    %322 = vmatpush1.bf16.msra.mxu0 0
    %323 = vmatprep.mubr.bf16.mxu0 0
    %324 = vmatmul.mubr.bf16.gmra.mrb[0].mxu0 %v289
    %v325 = vpop.f32.mrb[0].mxu0
    %v326 = vadd.f32 %v286, %v325
    %v327 = vpop.f32.mrb[0].mxu0
    %v328 = vpop.f32.mrb[0].mxu0
    %v329 = vadd.f32 %v286, %v328
    %v330 = vpop.f32.mrb[0].mxu0
    %331 = vdwg.mxu0
    %v332 = vmax.f32 %v326, 0.0
    %v333 = vmax.f32 %v329, 0.0
    %334 = vst.msk [vmem:[#allocation17] sm:$0xff] %vm227, %v332
    %335 = vst.msk [vmem:[#allocation17 + $0x8] sm:$0xff] %vm227, %v333
    %v336 = vld [vmem:[#allocation14] sm:$0x1]
    %v337 = vld [vmem:[#allocation16] sm:$0x1]
    %v339 = vsel %vm227, %v336, 0
    %v342 = vsel %vm227, %v332, 0
    %v345 = vsel %vm227, %v333, 0
    %347 = vmatprep.subr.mxu0 0.0
    %348 = vmatpush1.xpose.msra.mxu0 %v342
    %349 = vmatprep.subr.mxu0 0.0
    %350 = vmatpush1.xpose.msra.mxu0 %v345
    %351 = vmatprep.subr.mxu0 0.0
    %352 = vmatpush1.xpose.msra.mxu0 0.0
    %353 = vmatprep.subr.mxu0 0.0
    %354 = vmatpush1.xpose.msra.mxu0 0.0
    %355 = vmatprep.subr.mxu0 0.0
    %356 = vmatpush1.xpose.msra.mxu0 0.0
    %357 = vmatprep.subr.mxu0 0.0
    %358 = vmatpush1.xpose.msra.mxu0 0.0
    %359 = vmatprep.subr.mxu0 0.0
    %360 = vmatpush1.xpose.msra.mxu0 0.0
    %361 = vmatprep.subr.mxu0 0.0
    %362 = vmatpush1.xpose.msra.mxu0 0.0
    %363 = vmatprep.subr.mxu0 0.0
    %364 = vmatpush1.xpose.msra.mxu0 0.0
    %365 = vmatprep.subr.mxu0 0.0
    %366 = vmatpush1.xpose.msra.mxu0 0.0
    %367 = vmatprep.subr.mxu0 0.0
    %368 = vmatpush1.xpose.msra.mxu0 0.0
    %369 = vmatprep.subr.mxu0 0.0
    %370 = vmatpush1.xpose.msra.mxu0 0.0
    %371 = vmatprep.subr.mxu0 0.0
    %372 = vmatpush1.xpose.msra.mxu0 0.0
    %373 = vmatprep.subr.mxu0 0.0
    %374 = vmatpush1.xpose.msra.mxu0 0.0
    %375 = vmatprep.subr.mxu0 0.0
    %376 = vmatpush1.xpose.msra.mxu0 0.0
    %377 = vmatprep.subr.mxu0 0.0
    %378 = vmatpush1.xpose.msra.mxu0 0.0
    %379 = vmatprep.subr.mxu0 0.0
    %380 = vmatpush1.xpose.msra.mxu0 0.0
    %381 = vmatprep.subr.mxu0 0.0
    %382 = vmatpush1.xpose.msra.mxu0 0.0
    %383 = vmatprep.subr.mxu0 0.0
    %384 = vmatpush1.xpose.msra.mxu0 0.0
    %385 = vmatprep.subr.mxu0 0.0
    %386 = vmatpush1.xpose.msra.mxu0 0.0
    %387 = vmatprep.subr.mxu0 0.0
    %388 = vmatpush1.xpose.msra.mxu0 0.0
    %389 = vmatprep.subr.mxu0 0.0
    %390 = vmatpush1.xpose.msra.mxu0 0.0
    %391 = vmatprep.subr.mxu0 0.0
    %392 = vmatpush1.xpose.msra.mxu0 0.0
    %393 = vmatprep.subr.mxu0 0.0
    %394 = vmatpush1.xpose.msra.mxu0 0.0
    %395 = vmatprep.subr.mxu0 0.0
    %396 = vmatpush1.xpose.msra.mxu0 0.0
    %397 = vmatprep.subr.mxu0 0.0
    %398 = vmatpush1.xpose.msra.mxu0 0.0
    %399 = vmatprep.subr.mxu0 0.0
    %400 = vmatpush1.xpose.msra.mxu0 0.0
    %401 = vmatprep.subr.mxu0 0.0
    %402 = vmatpush1.xpose.msra.mxu0 0.0
    %403 = vmatprep.subr.mxu0 0.0
    %404 = vmatpush1.xpose.msra.mxu0 0.0
    %405 = vmatprep.subr.mxu0 0.0
    %406 = vmatpush1.xpose.msra.mxu0 0.0
    %407 = vmatprep.subr.mxu0 0.0
    %408 = vmatpush1.xpose.msra.mxu0 0.0
    %409 = vmatprep.subr.mxu0 0.0
    %410 = vmatpush1.xpose.msra.mxu0 0.0
    %411 = vmatprep.mubr.f32.mxu0 0.0
    %412 = vmatmul.mubr.f32.gmra.mrb[0].mxu0 %v339
    %v413 = vpop.f32.mrb[0].mxu0
    %v414 = vadd.f32 %v337, %v413
    %v415 = vpop.f32.mrb[0].mxu0
    %416 = vdwg.mxu0
    %v417 = vxor.u32 %v414, 2147483648
    %v418 = vmul.f32 %v417, 1.442695
    %v419 = vpow.pop %v418
    %v420 = vadd.f32 %v419, 1.0
    %v421 = vrcp.pop %v420
    %v422 = vmul.f32 1.0, %v421
    %vm423 = vcmask 122880
    %424 = vst.msk [vmem:[#allocation20] sm:$0x1] %vm423, %v422
    %v425 = vld [vmem:[#allocation5] sm:$0xf]
    %v426 = vld [vmem:[#allocation5 + $0x4] sm:$0xf]
    %s427 = sshra.s32 %s152, 3
    %s428 = sand.u32 %s152, 7
    %s429 = smul.addr %s427, 4
    %s430 = scalar_lea.vmem [#allocation5], %s429
    %v431 = vld [vmem:[%s430] sm:$0xf]
    %v432 = vld [vmem:[%s430 + $0x4] sm:$0xf]
    %v435 = vunpack.c.l.b16 %v431
    %v436 = vunpack.c.l.b16 %v432
    %v437 = vpack.c.b16 %v436, %v435
    %v440 = vunpack.c.l.b16 %v425
    %v441 = vunpack.c.l.b16 %v426
    %v442 = vpack.c.b16 %v441, %v440
    %v445 = vsel %vm166, %v437, 0
    %447 = vmatprep.subr.bf16.mxu0 0
    %448 = vmatpush1.bf16.msra.mxu0 %v442
    %449 = vmatprep.subr.bf16.mxu0 0
    %450 = vmatpush1.bf16.msra.mxu0 0
    %451 = vmatprep.subr.bf16.mxu0 0
    %452 = vmatpush1.bf16.msra.mxu0 0
    %453 = vmatprep.subr.bf16.mxu0 0
    %454 = vmatpush1.bf16.msra.mxu0 0
    %455 = vmatprep.subr.bf16.mxu0 0
    %456 = vmatpush1.bf16.msra.mxu0 0
    %457 = vmatprep.subr.bf16.mxu0 0
    %458 = vmatpush1.bf16.msra.mxu0 0
    %459 = vmatprep.subr.bf16.mxu0 0
    %460 = vmatpush1.bf16.msra.mxu0 0
    %461 = vmatprep.subr.bf16.mxu0 0
    %462 = vmatpush1.bf16.msra.mxu0 0
    %463 = vmatprep.subr.bf16.mxu0 0
    %464 = vmatpush1.bf16.msra.mxu0 0
    %465 = vmatprep.subr.bf16.mxu0 0
    %466 = vmatpush1.bf16.msra.mxu0 0
    %467 = vmatprep.subr.bf16.mxu0 0
    %468 = vmatpush1.bf16.msra.mxu0 0
    %469 = vmatprep.subr.bf16.mxu0 0
    %470 = vmatpush1.bf16.msra.mxu0 0
    %471 = vmatprep.subr.bf16.mxu0 0
    %472 = vmatpush1.bf16.msra.mxu0 0
    %473 = vmatprep.subr.bf16.mxu0 0
    %474 = vmatpush1.bf16.msra.mxu0 0
    %475 = vmatprep.subr.bf16.mxu0 0
    %476 = vmatpush1.bf16.msra.mxu0 0
    %477 = vmatprep.subr.bf16.mxu0 0
    %478 = vmatpush1.bf16.msra.mxu0 0
    %479 = vmatprep.mubr.bf16.mxu0 0
    %480 = vmatmul.mubr.bf16.gmra.mrb[0].mxu0 %v445
    %v481 = vpop.f32.mrb[0].mxu0
    %v482 = vadd.f32 0.0, %v481
    %v483 = vpop.f32.mrb[0].mxu0
    %v484 = vpop.f32.mrb[0].mxu0
    %v485 = vadd.f32 0.0, %v484
    %v486 = vpop.f32.mrb[0].mxu0
    %487 = vdwg.mxu0
    %v488 = vpack.c.bf16 %v485, %v482
    %v490 = vsel %vm166, %v488, 0
    %492 = vmatprep.subr.bf16.mxu0 0
    %493 = vmatpush1.bf16.msra.mxu0 %v442
    %494 = vmatprep.subr.bf16.mxu0 0
    %495 = vmatpush1.bf16.msra.mxu0 0
    %496 = vmatprep.subr.bf16.mxu0 0
    %497 = vmatpush1.bf16.msra.mxu0 0
    %498 = vmatprep.subr.bf16.mxu0 0
    %499 = vmatpush1.bf16.msra.mxu0 0
    %500 = vmatprep.subr.bf16.mxu0 0
    %501 = vmatpush1.bf16.msra.mxu0 0
    %502 = vmatprep.subr.bf16.mxu0 0
    %503 = vmatpush1.bf16.msra.mxu0 0
    %504 = vmatprep.subr.bf16.mxu0 0
    %505 = vmatpush1.bf16.msra.mxu0 0
    %506 = vmatprep.subr.bf16.mxu0 0
    %507 = vmatpush1.bf16.msra.mxu0 0
    %508 = vmatprep.subr.bf16.mxu0 0
    %509 = vmatpush1.bf16.msra.mxu0 0
    %510 = vmatprep.subr.bf16.mxu0 0
    %511 = vmatpush1.bf16.msra.mxu0 0
    %512 = vmatprep.subr.bf16.mxu0 0
    %513 = vmatpush1.bf16.msra.mxu0 0
    %514 = vmatprep.subr.bf16.mxu0 0
    %515 = vmatpush1.bf16.msra.mxu0 0
    %516 = vmatprep.subr.bf16.mxu0 0
    %517 = vmatpush1.bf16.msra.mxu0 0
    %518 = vmatprep.subr.bf16.mxu0 0
    %519 = vmatpush1.bf16.msra.mxu0 0
    %520 = vmatprep.subr.bf16.mxu0 0
    %521 = vmatpush1.bf16.msra.mxu0 0
    %522 = vmatprep.subr.bf16.mxu0 0
    %523 = vmatpush1.bf16.msra.mxu0 0
    %524 = vmatprep.mubr.bf16.mxu0 0
    %525 = vmatmul.mubr.bf16.gmra.mrb[0].mxu0 %v490
    %v526 = vpop.f32.mrb[0].mxu0
    %v527 = vadd.f32 0.0, %v526
    %v528 = vpop.f32.mrb[0].mxu0
    %v529 = vpop.f32.mrb[0].mxu0
    %v530 = vadd.f32 0.0, %v529
    %v531 = vpop.f32.mrb[0].mxu0
    %532 = vdwg.mxu0
    %v533 = vunpack.c.l.bf16 %v431
    %v534 = vunpack.c.l.bf16 %v432
    %v535 = vadd.f32 %v533, %v482
    %v536 = vadd.f32 %v534, %v485
    %v537 = vadd.f32 %v535, %v527
    %v538 = vadd.f32 %v536, %v530
    %vm539 = vcmp.gt.f32.partialorder %v537, 0.0
    %vm540 = vcmp.gt.f32.partialorder %v538, 0.0
    %v541 = vsel %vm539, 1, 0
    %v542 = vsel %vm540, 1, 0
    %v543 = vcvt.s32.f32 %v541
    %v544 = vcvt.s32.f32 %v542
    %545 = vst.msk [vmem:[#allocation18] sm:$0xff] %vm166, %v543
    %546 = vst.msk [vmem:[#allocation18 + $0x8] sm:$0xff] %vm166, %v544
    // Predicated region
    $region74: #{tpu_custom_call.1} parent=1 // pred_check
      _
    $region75: #{tpu_custom_call.1} parent=1 // pred_check_branch
      %548 = sbr.rel (0) target = $region77
    $region76: #{tpu_custom_call.1} parent=1 // pred_region
      %s550 = ssub.s32 256, 256
      %551 = vsyncadd [#allocation4], %s550
      %s552 = sshll.u32 [#allocation17], 4
      %s553 = int_to_ptr.vmem [resolvable:$true] %s552
      %558 = dma.vmem_to_hbm [thread:$0]  %s553, 256, %s9, [#allocation4], 128, 128, 8
    $region77: #{tpu_custom_call.1} parent=1 // pred_fallthru
      _
    // Predicated region
    $region78: #{tpu_custom_call.1} parent=1 // pred_check
      _
    $region79: #{tpu_custom_call.1} parent=1 // pred_check_branch
      %560 = sbr.rel (0) target = $region81
    $region80: #{tpu_custom_call.1} parent=1 // pred_region
      %s562 = ssub.s32 256, 256
      %563 = vsyncadd [#allocation19], %s562
      %s564 = sshll.u32 [#allocation18], 4
      %s565 = int_to_ptr.vmem [resolvable:$true] %s564
      %570 = dma.vmem_to_hbm [thread:$0]  %s565, 256, %s10, [#allocation19], 128, 128, 8
    $region81: #{tpu_custom_call.1} parent=1 // pred_fallthru
      _
    // Predicated region
    $region82: #{tpu_custom_call.1} parent=1 // pred_check
      _
    $region83: #{tpu_custom_call.1} parent=1 // pred_check_branch
      %572 = sbr.rel (0) target = $region85
    $region84: #{tpu_custom_call.1} parent=1 // pred_region
      %s574 = ssub.s32 16, 16
      %575 = vsyncadd [#allocation19], %s574
      %s577 = sshll.u32 [#allocation20], 4
      %s578 = int_to_ptr.vmem [resolvable:$true] %s577
      %580 = dma.vmem_to_hbm [thread:$0]  %s578, 16, %s11, [#allocation19]
    $region85: #{tpu_custom_call.1} parent=1 // pred_fallthru
      _
    // Predicated region
    $region86: #{tpu_custom_call.1} parent=1 // pred_check
      _
    $region87: #{tpu_custom_call.1} parent=1 // pred_check_branch
      %582 = sbr.rel (0) target = $region89
    $region88: #{tpu_custom_call.1} parent=1 // pred_region
      %583 = dma.done [#allocation4], 256
    $region89: #{tpu_custom_call.1} parent=1 // pred_fallthru
      _
    // Predicated region
    $region90: #{tpu_custom_call.1} parent=1 // pred_check
      _
    $region91: #{tpu_custom_call.1} parent=1 // pred_check_branch
      %585 = sbr.rel (0) target = $region93
    $region92: #{tpu_custom_call.1} parent=1 // pred_region
      %586 = dma.done [#allocation19], 256
    $region93: #{tpu_custom_call.1} parent=1 // pred_fallthru
      _
    // Predicated region
    $region94: #{tpu_custom_call.1} parent=1 // pred_check
      _
    $region95: #{tpu_custom_call.1} parent=1 // pred_check_branch
      %588 = sbr.rel (0) target = $region97
    $region96: #{tpu_custom_call.1} parent=1 // pred_region
      %589 = dma.done [#allocation19], 16
    $region97: #{tpu_custom_call.1} parent=1 // pred_fallthru
      _
    %590 = vsyncpa [#allocation3], 1
    %591 = vsyncpa [#allocation6], 1
    %592 = vsyncpa [#allocation9], 1
    %593 = vsyncpa [#allocation12], 1
    %594 = vsyncpa [#allocation15], 1
    %595 = vsyncpa [#allocation4], 1
    %596 = vsyncpa [#allocation19], 1

</llo_original>
